<compile_context>
chip_gen: v7x
topology: tpu7x:2x2x1
jax: 0.10.0
libtpu: 0.0.40
codegen_flags: <defaults>
</compile_context>

<pallas_src>
import jax
import jax.numpy as jnp
import numpy as np
from jax import lax
from jax.experimental import pallas as pl
from jax.experimental.pallas import tpu as pltpu


def _exist_head_kernel(x_ref, w_ref, b_ref, out_ref):
    # x_ref: (tm, C) activations, w_ref: (O, C) torch-layout weight,
    # b_ref: (1, O) bias, out_ref: (tm, O).
    # Contract directly against the untransposed weight: (tm,C) x (O,C) -> (tm,O),
    # contraction over axis 1 of both, f32 MXU accumulation.
    z = lax.dot_general(
        x_ref[...],
        w_ref[...],
        dimension_numbers=(((1,), (1,)), ((), ())),
        preferred_element_type=jnp.float32,
    )
    z = z + b_ref[...]
    # sigmoid = 1 / (1 + exp(-z)): exp and reciprocal both go through the EUP
    # slot (no VPU divide sequence).  Epilogue stays in f32 (v5e-safe).
    out_ref[...] = pl.reciprocal(1.0 + jnp.exp(-z), approx=False).astype(out_ref.dtype)


def _exist_head_pallas(x_nc, w_oc, b_2d, *, tm=256):
    N, C = x_nc.shape
    O = w_oc.shape[0]
    cost = pl.CostEstimate(
        flops=2 * N * C * O,
        transcendentals=N * O,
        bytes_accessed=4 * (N * C + O * C + N * O),
    )
    out_shape = jax.ShapeDtypeStruct((N, O), jnp.float32)

    if N % tm != 0 or N <= tm:
        # Tiny / irregular batch: gridless, every operand resident in VMEM.
        # (A single block is both simplest and fastest here; wall time is
        # dominated by fixed launch cost, not VMEM or MXU tiling.)
        return pl.pallas_call(
            _exist_head_kernel,
            out_shape=out_shape,
            in_specs=[pl.BlockSpec(memory_space=pltpu.MemorySpace.VMEM)] * 3,
            out_specs=pl.BlockSpec(memory_space=pltpu.MemorySpace.VMEM),
            cost_estimate=cost,
        )(x_nc, w_oc, b_2d)

    # Large batch: 1-D parallel grid over N so the work can be split across
    # TensorCores (v7x megacore).  tm is a multiple of 8 (sublane-aligned);
    # weight/bias blocks are resident across the grid.
    grid = (N // tm,)
    return pl.pallas_call(
        _exist_head_kernel,
        out_shape=out_shape,
        grid_spec=pltpu.PrefetchScalarGridSpec(
            num_scalar_prefetch=0,
            grid=grid,
            in_specs=[
                pl.BlockSpec((tm, C), lambda i: (i, 0)),
                pl.BlockSpec((O, C), lambda i: (0, 0)),
                pl.BlockSpec((1, O), lambda i: (0, 0)),
            ],
            out_specs=pl.BlockSpec((tm, O), lambda i: (i, 0)),
        ),
        compiler_params=pltpu.CompilerParams(dimension_semantics=("parallel",)),
        cost_estimate=cost,
    )(x_nc, w_oc, b_2d)


@jax.jit
def exist_head_forward(x_nchw, fc_weight, fc_bias):
    """Forward pass of ExistHead.

    x_nchw:    (N, C, 1, 1)  pooled features (NCHW, spatial already reduced)
    fc_weight: (O, C)        torch nn.Linear weight layout (NOT transposed)
    fc_bias:   (O,)          torch nn.Linear bias
    returns:   (N, O)        sigmoid(Linear(squeeze(dropout(x))))
    """
    # TODO(synk): nn.Dropout2d(0.1) in training mode (stochastic channel drop +
    # 1/0.9 rescale) is not implemented; inference-mode dropout is the identity.
    N, C = x_nchw.shape[0], x_nchw.shape[1]
    # torch.squeeze on (N, C, 1, 1) -> (N, C).  Assumes N > 1; with N == 1
    # PyTorch's squeeze would also drop the batch dim.
    x = x_nchw.reshape(N, C)
    b_2d = fc_bias.reshape(1, -1)            # 2-D bias for clean VMEM layout
    return _exist_head_pallas(x, fc_weight, b_2d)


# ---------------- pure-JAX reference (same semantics as the PyTorch forward) --


def ref_forward(x_nchw, fc_weight, fc_bias):
    N, C = x_nchw.shape[0], x_nchw.shape[1]
    x = x_nchw.reshape(N, C)
    z = x @ fc_weight.T + fc_bias
    return 1.0 / (1.0 + jnp.exp(-z))


if __name__ == "__main__":
    # cfg.resa.input_channel = 128, cfg.num_classes = 5  ->  fc: 128 -> 4
    C, NUM_CLASSES = 128, 5
    O = NUM_CLASSES - 1

    key = jax.random.PRNGKey(0)
    kx, kw, kb, kx2 = jax.random.split(key, 4)

    # Deterministic synthetic nn.Linear parameters (torch layout).
    bound = 1.0 / np.sqrt(C)
    fc_weight = jax.random.uniform(kw, (O, C), jnp.float32, -bound, bound)
    fc_bias = jax.random.uniform(kb, (O,), jnp.float32, -bound, bound)

    # 1) Tiny batch (gridless path), matching the module's typical use.
    N = 2
    x = jax.random.normal(kx, (N, C, 1, 1), jnp.float32)
    out = jax.block_until_ready(exist_head_forward(x, fc_weight, fc_bias))
    assert out.shape == (N, O)
    ref = jax.block_until_ready(ref_forward(x, fc_weight, fc_bias))
    np.testing.assert_allclose(np.asarray(out), np.asarray(ref),
                               atol=1e-5, rtol=1e-5)

    # 2) Larger batch exercising the parallel-grid path (tm = 256, grid = (2,)).
    N2 = 512
    x2 = jax.random.normal(kx2, (N2, C, 1, 1), jnp.float32)
    out2 = jax.block_until_ready(exist_head_forward(x2, fc_weight, fc_bias))
    assert out2.shape == (N2, O)
    ref2 = jax.block_until_ready(ref_forward(x2, fc_weight, fc_bias))
    np.testing.assert_allclose(np.asarray(out2), np.asarray(ref2),
                               atol=1e-5, rtol=1e-5)

    print("KERNEL_OK")
</pallas_src>

<mosaic_0001>
module attributes {stable_mosaic.version = 11 : i64} {
  func.func @_exist_head_kernel(%arg0: memref<2x128xf32, #tpu.memory_space<vmem>>, %arg1: memref<4x128xf32, #tpu.memory_space<vmem>>, %arg2: memref<1x4xf32, #tpu.memory_space<vmem>>, %arg3: memref<2x4xf32, #tpu.memory_space<vmem>>) attributes {dimension_semantics = [], scalar_prefetch = 0 : i64, scratch_operands = 0 : i64, tpu.core_type = #tpu.core_type<tc>} {
    %c0 = arith.constant 0 : index
    %c0_0 = arith.constant 0 : index
    %0 = vector.load %arg0[%c0, %c0_0] : memref<2x128xf32, #tpu.memory_space<vmem>>, vector<2x128xf32>
    %c0_1 = arith.constant 0 : index
    %c0_2 = arith.constant 0 : index
    %1 = vector.load %arg1[%c0_1, %c0_2] : memref<4x128xf32, #tpu.memory_space<vmem>>, vector<4x128xf32>
    %cst = arith.constant dense<0.000000e+00> : vector<2x4xf32>
    %2 = tpu.matmul %0, %1, %cst {dimension_numbers = #tpu.dot_dimension_numbers<[1], [1], [0], [0], [0, 0, 1, 0], [], []>} : vector<2x128xf32>, vector<4x128xf32>, vector<2x4xf32> -> vector<2x4xf32>
    %c0_3 = arith.constant 0 : index
    %c0_4 = arith.constant 0 : index
    %3 = vector.load %arg2[%c0_3, %c0_4] : memref<1x4xf32, #tpu.memory_space<vmem>>, vector<1x4xf32>
    %4 = vector.broadcast %3 : vector<1x4xf32> to vector<2x4xf32>
    %5 = arith.addf %2, %4 : vector<2x4xf32>
    %cst_5 = arith.constant 0.000000e+00 : f32
    %6 = vector.broadcast %cst_5 : f32 to vector<2x4xf32>
    %7 = arith.subf %6, %5 : vector<2x4xf32>
    %8 = math.exp %7 : vector<2x4xf32>
    %cst_6 = arith.constant 1.000000e+00 : f32
    %9 = vector.broadcast %cst_6 : f32 to vector<2x4xf32>
    %10 = arith.addf %9, %8 : vector<2x4xf32>
    %11 = tpu.reciprocal %10 : vector<2x4xf32> -> vector<2x4xf32>
    %c0_7 = arith.constant 0 : index
    %c0_8 = arith.constant 0 : index
    %12 = vector.load %arg3[%c0_7, %c0_8] : memref<2x4xf32, #tpu.memory_space<vmem>>, vector<2x4xf32>
    tpu.vector_store %arg3[%c0_7, %c0_8], %11 {strides = array<i32>} : memref<2x4xf32, #tpu.memory_space<vmem>>, vector<2x4xf32>,
    return
  }
}

</mosaic_0001>

<llo_original>
// kernel: exist_head_forward.1
$region0: #{exist_head_forward.1}
  #allocation0 [shape = 'u32[]', space=smem, size = 0x4, offset = 0x4, fixed_abs, tag = 'smem constant byte address 0x4 - core index']
  #allocation1 [shape = 'u32[144,128]{1,0:T(1,128)}', space=vmem, size = 0x12000, scoped, tag = 'internal scratch']
  %s0 = inlined_call_operand.vmem [shape: f32[2,128], index: 0, kind: input, shape index: {}]
  %s1 = inlined_call_operand.vmem [shape: f32[4,128], index: 1, kind: input, shape index: {}]
  %s2 = inlined_call_operand.vmem [shape: f32[1,4], index: 2, kind: input, shape index: {}]
  %s3 = inlined_call_operand.hbm [shape: f32[2,4], index: 3, kind: output, shape index: {}]
  %s4 = sld [smem:[#allocation0]]
  $region22: #{exist_head_forward.1} parent=0
    _
  %s6 = ssub.s32 1, %s4
  %s7 = scalar_select 0, %s6, %s4
  $region1: #{exist_head_forward.1} parent=0
    #allocation2 [shape = 'u8[1024]{0}', space=vmem, size = 0x400, scoped, tag = 'output window, operand 0, single buffered']
    #allocation3 [shape = 's32[1]{0}', space=sflag, size = 0x4, scoped, tag = 'scoped memory for exist_head_forward.1']
    %8 = vsyncpa [#allocation3], 0
    // Predicated region
    $region2: #{exist_head_forward.1} parent=1 // pred_check
      _
    $region3: #{exist_head_forward.1} parent=1 // pred_check_branch
      %10 = sbr.rel (0) target = $region5
    $region4: #{exist_head_forward.1} parent=1 // pred_region
      _
    $region5: #{exist_head_forward.1} parent=1 // pred_fallthru
      _
    // Predicated region
    $region6: #{exist_head_forward.1} parent=1 // pred_check
      _
    $region7: #{exist_head_forward.1} parent=1 // pred_check_branch
      %12 = sbr.rel (0) target = $region9
    $region8: #{exist_head_forward.1} parent=1 // pred_region
      _
    $region9: #{exist_head_forward.1} parent=1 // pred_fallthru
      _
    // Predicated region
    $region10: #{exist_head_forward.1} parent=1 // pred_check
      _
    $region11: #{exist_head_forward.1} parent=1 // pred_check_branch
      %14 = sbr.rel (0) target = $region13
    $region12: #{exist_head_forward.1} parent=1 // pred_region
      _
    $region13: #{exist_head_forward.1} parent=1 // pred_fallthru
      _
    %v15 = vld [vmem:[%s0] sm:$0x3]
    %v16 = vld [vmem:[%s1] sm:$0xf]
    %v17 = vld [vmem:[%s2] sm:$0x1]
    %v19 = vlaneseq
    %v20 = vshrl.u32 %v19, 7
    %v21 = vsub.s32 0, %v20
    %v22 = vrot.slane %v17, %v21
    %24 = vmatprep.subr.mxu0 0.0
    %25 = vmatpush1.xpose.msra.mxu0 %v16
    %26 = vmatprep.subr.mxu0 0.0
    %27 = vmatpush1.xpose.msra.mxu0 0.0
    %28 = vmatprep.subr.mxu0 0.0
    %29 = vmatpush1.xpose.msra.mxu0 0.0
    %30 = vmatprep.subr.mxu0 0.0
    %31 = vmatpush1.xpose.msra.mxu0 0.0
    %32 = vmatprep.subr.mxu0 0.0
    %33 = vmatpush1.xpose.msra.mxu0 0.0
    %34 = vmatprep.subr.mxu0 0.0
    %35 = vmatpush1.xpose.msra.mxu0 0.0
    %36 = vmatprep.subr.mxu0 0.0
    %37 = vmatpush1.xpose.msra.mxu0 0.0
    %38 = vmatprep.subr.mxu0 0.0
    %39 = vmatpush1.xpose.msra.mxu0 0.0
    %40 = vmatprep.subr.mxu0 0.0
    %41 = vmatpush1.xpose.msra.mxu0 0.0
    %42 = vmatprep.subr.mxu0 0.0
    %43 = vmatpush1.xpose.msra.mxu0 0.0
    %44 = vmatprep.subr.mxu0 0.0
    %45 = vmatpush1.xpose.msra.mxu0 0.0
    %46 = vmatprep.subr.mxu0 0.0
    %47 = vmatpush1.xpose.msra.mxu0 0.0
    %48 = vmatprep.subr.mxu0 0.0
    %49 = vmatpush1.xpose.msra.mxu0 0.0
    %50 = vmatprep.subr.mxu0 0.0
    %51 = vmatpush1.xpose.msra.mxu0 0.0
    %52 = vmatprep.subr.mxu0 0.0
    %53 = vmatpush1.xpose.msra.mxu0 0.0
    %54 = vmatprep.subr.mxu0 0.0
    %55 = vmatpush1.xpose.msra.mxu0 0.0
    %56 = vmatprep.subr.mxu0 0.0
    %57 = vmatpush1.xpose.msra.mxu0 0.0
    %58 = vmatprep.subr.mxu0 0.0
    %59 = vmatpush1.xpose.msra.mxu0 0.0
    %60 = vmatprep.subr.mxu0 0.0
    %61 = vmatpush1.xpose.msra.mxu0 0.0
    %62 = vmatprep.subr.mxu0 0.0
    %63 = vmatpush1.xpose.msra.mxu0 0.0
    %64 = vmatprep.subr.mxu0 0.0
    %65 = vmatpush1.xpose.msra.mxu0 0.0
    %66 = vmatprep.subr.mxu0 0.0
    %67 = vmatpush1.xpose.msra.mxu0 0.0
    %68 = vmatprep.subr.mxu0 0.0
    %69 = vmatpush1.xpose.msra.mxu0 0.0
    %70 = vmatprep.subr.mxu0 0.0
    %71 = vmatpush1.xpose.msra.mxu0 0.0
    %72 = vmatprep.subr.mxu0 0.0
    %73 = vmatpush1.xpose.msra.mxu0 0.0
    %74 = vmatprep.subr.mxu0 0.0
    %75 = vmatpush1.xpose.msra.mxu0 0.0
    %76 = vmatprep.subr.mxu0 0.0
    %77 = vmatpush1.xpose.msra.mxu0 0.0
    %78 = vmatprep.subr.mxu0 0.0
    %79 = vmatpush1.xpose.msra.mxu0 0.0
    %80 = vmatprep.subr.mxu0 0.0
    %81 = vmatpush1.xpose.msra.mxu0 0.0
    %82 = vmatprep.subr.mxu0 0.0
    %83 = vmatpush1.xpose.msra.mxu0 0.0
    %84 = vmatprep.subr.mxu0 0.0
    %85 = vmatpush1.xpose.msra.mxu0 0.0
    %86 = vmatprep.subr.mxu0 0.0
    %87 = vmatpush1.xpose.msra.mxu0 0.0
    %88 = vmatprep.mubr.f32.mxu0 0.0
    %89 = vmatmul.mubr.f32.gmra.mrb[0].mxu0 %v15
    %v90 = vpop.f32.mrb[0].mxu0
    %v91 = vadd.f32 %v22, %v90
    %v92 = vpop.f32.mrb[0].mxu0
    %93 = vdwg.mxu0
    %v94 = vsub.f32 0.0, %v91
    %v95 = vmul.f32 %v94, 1.442695
    %v96 = vpow.pop %v95
    %v97 = vadd.f32 %v96, 1.0
    %v98 = vrcp.pop %v97
    %vm99 = vcmask 25600
    %100 = vst.msk [vmem:[#allocation2] sm:$0x3] %vm99, %v98
    // Predicated region
    $region14: #{exist_head_forward.1} parent=1 // pred_check
      _
    $region15: #{exist_head_forward.1} parent=1 // pred_check_branch
      %102 = sbr.rel (0) target = $region17
    $region16: #{exist_head_forward.1} parent=1 // pred_region
      %s104 = ssub.s32 32, 32
      %105 = vsyncadd [#allocation3], %s104
      %s107 = sshll.u32 [#allocation2], 4
      %s108 = int_to_ptr.vmem [resolvable:$true] %s107
      %110 = dma.vmem_to_hbm [thread:$0]  %s108, 32, %s3, [#allocation3]
    $region17: #{exist_head_forward.1} parent=1 // pred_fallthru
      _
    // Predicated region
    $region18: #{exist_head_forward.1} parent=1 // pred_check
      _
    $region19: #{exist_head_forward.1} parent=1 // pred_check_branch
      %112 = sbr.rel (0) target = $region21
    $region20: #{exist_head_forward.1} parent=1 // pred_region
      %113 = dma.done [#allocation3], 32
    $region21: #{exist_head_forward.1} parent=1 // pred_fallthru
      _
    %114 = vsyncpa [#allocation3], 1

</llo_original>
